<compile_context>
chip_gen: v5e
topology: v5e:2x2
jax: 0.10.0
libtpu: 0.0.40
codegen_flags: <defaults>
</compile_context>

<pallas_src>
import functools
import math

import jax
import jax.numpy as jnp
from jax.experimental import pallas as pl
from jax.experimental.pallas import tpu as pltpu


def _norm_kernel(x_ref, alpha_ref, bias_ref, o_ref, *, d_model, eps):
    # x_ref: (tile_rows, d_model); alpha_ref / bias_ref: (1, d_model).
    # For the partial last grid block, rows past the array end hold undefined
    # data; all reductions below are per-row (axis=-1), so garbage stays in
    # those rows, and Pallas drops their stores.
    x = x_ref[...].astype(jnp.float32)

    mean = jnp.sum(x, axis=-1, keepdims=True) * (1.0 / d_model)
    xc = x - mean
    ssq = jnp.sum(xc * xc, axis=-1, keepdims=True)

    # torch.std default: unbiased (divide by N-1), then sqrt.
    if d_model > 1:
        var = ssq * (1.0 / (d_model - 1))
    else:
        var = ssq / jnp.float32(0.0)  # 0/0 -> NaN, matching torch.std on 1 elem
    std = jnp.sqrt(var)

    # Exact reciprocal (EUP seed + VALU refinement); plenty of slack in a
    # DMA-bound kernel, and it keeps the 1e-5 tolerance comfortably.
    inv = pl.reciprocal(std + eps, approx=False)

    y = (alpha_ref[...].astype(jnp.float32) * (xc * inv)
         + bias_ref[...].astype(jnp.float32))
    o_ref[...] = y.astype(o_ref.dtype)


def norm_pallas(x, alpha, bias, eps=1e-6, *, max_tile_rows=1024):
    """x: (..., d_model); alpha, bias: (d_model,)"""
    orig_shape = x.shape
    d_model = orig_shape[-1]
    rows = math.prod(orig_shape[:-1]) if len(orig_shape) > 1 else 1

    # --- Generation-aware VMEM sizing ---------------------------------------
    try:
        vmem_phys = int(pltpu.get_tpu_info().vmem_capacity_bytes)
    except Exception:
        vmem_phys = 64 * 1024 * 1024  # conservative: v7x per-TC physical VMEM
    # Leave headroom below physical (Mosaic scratch, semaphores, resident args).
    vmem_limit = min((vmem_phys * 3) // 4, 96 * 1024 * 1024)   # ~48 MiB v7x, 96 MiB v5e/v6e
    vmem_budget = (vmem_limit * 2) // 5                        # ~19 MiB v7x, ~38 MiB v5e/v6e

    # --- Row tile: biggest tile fitting the budget ---------------------------
    # The block is lane-padded inside VMEM to ceil(d/128)*128; the f32 working
    # copy (4 B/elem) dominates. in+out double-buffered + temporaries ~ 6x.
    d_lane = pl.cdiv(d_model, 128) * 128
    sublane = 16 if jnp.dtype(x.dtype).itemsize < 4 else 8  # bf16 packs 2 rows/sublane
    bytes_per_row = d_lane * 4
    tile_rows = vmem_budget // (bytes_per_row * 6)
    tile_rows = max(sublane, min(max_tile_rows, tile_rows))
    tile_rows -= tile_rows % sublane

    if rows <= sublane:
        # Tiny input: one full-array block (block dim == array dim is allowed).
        tile_rows = rows
    elif rows <= tile_rows:
        # Would be a single grid step: split in two so v7x's second TensorCore
        # gets work (free on v5e/v6e: one extra ~0.35 us grid step).
        tile_rows = pl.cdiv(pl.cdiv(rows, 2), sublane) * sublane

    grid = (pl.cdiv(rows, tile_rows),)

    # Free reshapes only — no padding, no extra HBM passes.
    x2 = x.reshape(rows, d_model)
    alpha2 = alpha.reshape(1, d_model)
    bias2 = bias.reshape(1, d_model)

    kernel = functools.partial(_norm_kernel, d_model=d_model, eps=eps)

    out2 = pl.pallas_call(
        kernel,
        out_shape=jax.ShapeDtypeStruct((rows, d_model), x.dtype),
        grid_spec=pltpu.PrefetchScalarGridSpec(
            num_scalar_prefetch=0,
            grid=grid,
            in_specs=[
                # Last block dim == full d_model (lane-masked stores are hidden
                # under DMA; beats 4x HBM inflation for narrow d_model).
                pl.BlockSpec((tile_rows, d_model), lambda i: (i, 0)),
                # alpha/bias stay resident: same (0, 0) block every step.
                pl.BlockSpec((1, d_model), lambda i: (0, 0)),
                pl.BlockSpec((1, d_model), lambda i: (0, 0)),
            ],
            out_specs=pl.BlockSpec((tile_rows, d_model), lambda i: (i, 0)),
        ),
        compiler_params=pltpu.CompilerParams(
            dimension_semantics=("parallel",),   # rows shard over v7x's 2 TCs
            vmem_limit_bytes=vmem_limit,
        ),
    )(x2, alpha2, bias2)

    return out2.reshape(orig_shape)


def norm_ref(x, alpha, bias, eps=1e-6):
    """Pure-JAX reference mirroring the PyTorch forward (torch.std is unbiased)."""
    x32 = x.astype(jnp.float32)
    mean = jnp.mean(x32, axis=-1, keepdims=True)
    d = x32.shape[-1]
    var_unbiased = jnp.sum((x32 - mean) ** 2, axis=-1, keepdims=True) / (d - 1)
    std = jnp.sqrt(var_unbiased)
    y = alpha * (x32 - mean) / (std + eps) + bias
    return y.astype(x.dtype)


if __name__ == "__main__":
    key = jax.random.PRNGKey(0)
    k1, k2, k3, k4 = jax.random.split(key, 4)

    # Test 1: module-implied shapes (batch, seq, d_model) with small D
    # (exercises the un-padded narrow-lane block, D=32 < 128).
    B, S, D = 2, 8, 32
    x = jax.random.normal(k1, (B, S, D), dtype=jnp.float32)
    alpha = jnp.ones((D,), dtype=jnp.float32)   # nn.Parameter(torch.ones(d_model))
    bias = jnp.zeros((D,), dtype=jnp.float32)   # nn.Parameter(torch.zeros(d_model))

    y = norm_pallas(x, alpha, bias, eps=1e-6)
    jax.block_until_ready(y)
    y_ref = norm_ref(x, alpha, bias, eps=1e-6)
    assert y.shape == x.shape
    assert jnp.allclose(y, y_ref, atol=1e-5, rtol=1e-5), "mismatch vs reference (test 1)"

    # Test 2: rows not divisible by the row tile (3*5 = 15 rows -> partial last
    # block handled by Pallas masking), lane-dense d_model, non-trivial affine.
    B2, S2, D2 = 3, 5, 256
    x2 = jax.random.normal(k2, (B2, S2, D2), dtype=jnp.float32) * 2.0 + 3.0
    a2 = jax.random.normal(k3, (D2,), dtype=jnp.float32)
    b2 = jax.random.normal(k4, (D2,), dtype=jnp.float32)
    y2 = norm_pallas(x2, a2, b2, eps=1e-6)
    jax.block_until_ready(y2)
    assert jnp.allclose(y2, norm_ref(x2, a2, b2, eps=1e-6),
                        atol=1e-5, rtol=1e-5), "mismatch vs reference (test 2)"

    print("KERNEL_OK")
</pallas_src>

<mosaic_0001>
module attributes {stable_mosaic.version = 11 : i64} {
  func.func @_norm_kernel(%arg0: i32, %arg1: memref<8x32xf32, #tpu.memory_space<vmem>>, %arg2: memref<1x32xf32, #tpu.memory_space<vmem>>, %arg3: memref<1x32xf32, #tpu.memory_space<vmem>>, %arg4: memref<8x32xf32, #tpu.memory_space<vmem>>) attributes {dimension_semantics = [#tpu.dimension_semantics<parallel>], iteration_bounds = array<i64: 2>, scalar_prefetch = 0 : i64, scratch_operands = 0 : i64, tpu.core_type = #tpu.core_type<tc>, window_params = [{transform_indices = @transform_0, window_bounds = array<i64: 8, 32>}, {pipeline_mode = #tpu.pipeline_mode<synchronous>, transform_indices = @transform_1, window_bounds = array<i64: 1, 32>}, {pipeline_mode = #tpu.pipeline_mode<synchronous>, transform_indices = @transform_2, window_bounds = array<i64: 1, 32>}, {transform_indices = @transform_3, window_bounds = array<i64: 8, 32>}]} {
    %c0 = arith.constant 0 : index
    %c0_0 = arith.constant 0 : index
    %0 = vector.load %arg1[%c0, %c0_0] : memref<8x32xf32, #tpu.memory_space<vmem>>, vector<8x32xf32>
    %cst = arith.constant dense<0.000000e+00> : vector<8xf32>
    %1 = vector.multi_reduction <add>, %0, %cst [1] : vector<8x32xf32> to vector<8xf32>
    %2 = vector.shape_cast %1 : vector<8xf32> to vector<8x1xf32>
    %cst_1 = arith.constant 3.125000e-02 : f32
    %3 = vector.broadcast %cst_1 : f32 to vector<8x1xf32>
    %4 = arith.mulf %2, %3 : vector<8x1xf32>
    %5 = vector.broadcast %4 : vector<8x1xf32> to vector<8x32xf32>
    %6 = arith.subf %0, %5 : vector<8x32xf32>
    %7 = arith.mulf %6, %6 : vector<8x32xf32>
    %cst_2 = arith.constant dense<0.000000e+00> : vector<8xf32>
    %8 = vector.multi_reduction <add>, %7, %cst_2 [1] : vector<8x32xf32> to vector<8xf32>
    %9 = vector.shape_cast %8 : vector<8xf32> to vector<8x1xf32>
    %cst_3 = arith.constant 0.0322580636 : f32
    %10 = vector.broadcast %cst_3 : f32 to vector<8x1xf32>
    %11 = arith.mulf %9, %10 : vector<8x1xf32>
    %12 = math.sqrt %11 : vector<8x1xf32>
    %cst_4 = arith.constant 9.99999997E-7 : f32
    %13 = vector.broadcast %cst_4 : f32 to vector<8x1xf32>
    %14 = arith.addf %12, %13 : vector<8x1xf32>
    %15 = tpu.reciprocal %14 : vector<8x1xf32> -> vector<8x1xf32>
    %c0_5 = arith.constant 0 : index
    %c0_6 = arith.constant 0 : index
    %16 = vector.load %arg2[%c0_5, %c0_6] : memref<1x32xf32, #tpu.memory_space<vmem>>, vector<1x32xf32>
    %17 = vector.broadcast %15 : vector<8x1xf32> to vector<8x32xf32>
    %18 = arith.mulf %6, %17 : vector<8x32xf32>
    %19 = vector.broadcast %16 : vector<1x32xf32> to vector<8x32xf32>
    %20 = arith.mulf %19, %18 : vector<8x32xf32>
    %c0_7 = arith.constant 0 : index
    %c0_8 = arith.constant 0 : index
    %21 = vector.load %arg3[%c0_7, %c0_8] : memref<1x32xf32, #tpu.memory_space<vmem>>, vector<1x32xf32>
    %22 = vector.broadcast %21 : vector<1x32xf32> to vector<8x32xf32>
    %23 = arith.addf %20, %22 : vector<8x32xf32>
    %c0_9 = arith.constant 0 : index
    %c0_10 = arith.constant 0 : index
    %24 = vector.load %arg4[%c0_9, %c0_10] : memref<8x32xf32, #tpu.memory_space<vmem>>, vector<8x32xf32>
    tpu.vector_store %arg4[%c0_9, %c0_10], %23 {strides = array<i32>} : memref<8x32xf32, #tpu.memory_space<vmem>>, vector<8x32xf32>,
    return
  }
  func.func @transform_0(%arg0: i32) -> (i32, i32) {
    %c0_i32 = arith.constant 0 : i32
    %c0_i32_0 = arith.constant 0 : i32
    return %arg0, %c0_i32 : i32, i32
  }
  func.func @transform_1(%arg0: i32) -> (i32, i32) {
    %c0_i32 = arith.constant 0 : i32
    %c0_i32_0 = arith.constant 0 : i32
    %c0_i32_1 = arith.constant 0 : i32
    return %c0_i32, %c0_i32_0 : i32, i32
  }
  func.func @transform_2(%arg0: i32) -> (i32, i32) {
    %c0_i32 = arith.constant 0 : i32
    %c0_i32_0 = arith.constant 0 : i32
    %c0_i32_1 = arith.constant 0 : i32
    return %c0_i32, %c0_i32_0 : i32, i32
  }
  func.func @transform_3(%arg0: i32) -> (i32, i32) {
    %c0_i32 = arith.constant 0 : i32
    %c0_i32_0 = arith.constant 0 : i32
    return %arg0, %c0_i32 : i32, i32
  }
}

</mosaic_0001>

<llo_original>
// kernel: tpu_custom_call.1
$region0: #{tpu_custom_call.1}
  #allocation0 [shape = 'u32[]', space=smem, size = 0x4, offset = 0x4, fixed_abs, tag = 'smem constant byte address 0x4 - core index']
  #allocation1 [shape = 'u32[72,128]{1,0:T(1,128)}', space=vmem, size = 0x9000, scoped, tag = 'internal scratch']
  %s0 = inlined_call_operand.hbm [shape: f32[16,32], index: 0, kind: input, shape index: {}]
  %s1 = inlined_call_operand.hbm [shape: f32[1,32], index: 1, kind: input, shape index: {}]
  %s2 = inlined_call_operand.vmem [shape: f32[1,32], index: 2, kind: input, shape index: {}]
  %s3 = inlined_call_operand.hbm [shape: f32[16,32], index: 3, kind: output, shape index: {}]
  %s4 = sld [smem:[#allocation0]]
  $region53: #{tpu_custom_call.1} parent=0
    _
  %s6 = ssub.s32 1, %s4
  %s7 = scalar_select 0, %s6, %s4
  $region1: #{tpu_custom_call.1} parent=0
    #allocation2 [shape = 'u8[8192]{0}', space=vmem, size = 0x2000, scoped, tag = 'input window, operand 0']
    #allocation3 [shape = 's32[2]{0}', space=sflag, size = 0x8, scoped, tag = 'scoped memory for tpu_custom_call.1']
    #allocation4 [shape = 's32[2]{0}', space=sflag, size = 0x8, scoped, tag = 'scoped memory for tpu_custom_call.1']
    #allocation5 [shape = 'u8[512]{0}', space=vmem, size = 0x400, scoped, tag = 'input window, operand 1, single buffered']
    #allocation6 [shape = 's32[1]{0}', space=sflag, size = 0x4, scoped, tag = 'scoped memory for tpu_custom_call.1']
    #allocation7 [shape = 'u8[8192]{0}', space=vmem, size = 0x2000, scoped, tag = 'output window, operand 0']
    %8 = vsyncpa [#allocation3], 0
    %s9 = scalar_lea.sflag [#allocation3], 1
    %10 = vsyncpa %s9, 0
    %11 = vsyncpa [#allocation6], 0
    %12 = vsyncpa [#allocation4], 0
    %s13 = scalar_lea.sflag [#allocation4], 1
    %14 = vsyncpa %s13, 0
    loop: start=0, step=1, limit=4
    $region2: #{tpu_custom_call.1} parent=1 // loop_pre_header
      _
    $region3: #{tpu_custom_call.1} parent=1 // loop_header
      %s16 = sphi 0, %s20
      %p17 = scmp.ge.s32.totalorder %s16, 4
      %s26 = sphi 0, %s28
      %s29 = sphi 0, %s26
      %s30 = sphi 0, %s29
      %s46 = sphi 0, %s30
      %s50 = sphi 0, %s50
      %s52 = sphi 0, %s50
      %s53 = sphi 0, %s52
      %s67 = sphi 0, %s53
      %s71 = sphi 0, %s71
      %s73 = sphi 0, %s71
      %s74 = sphi 0, %s73
      %s88 = sphi 0, %s74
      %s94 = sphi 0, %s96
      %s97 = sphi 0, %s94
      %s98 = sphi 0, %s97
      %s114 = sphi 0, %s98
    $region4: #{tpu_custom_call.1} parent=1 // loop_header_branch
      %19 = sbr.rel (%p17) target = $region8
    $region5: #{tpu_custom_call.1} parent=1 // loop_body
      %s21 = ssub.s32 %s16, 1
      %s22 = ssub.s32 %s16, 2
      %s23 = sadd.s32 %s16, 1
      %s24 = ssub.s32 %s16, %s23
      %p25 = scmp.eq.s32.totalorder %s24, 0
      %s27 = sadd.s32 %s26, 1
      %s28 = scalar_select %p25, %s26, %s27
      %p31 = pneg %p25
      %p32 = scmp.eq.s32.totalorder %s16, 1
      %p33 = por %p31, %p32
      %p34 = scmp.ne.s32.totalorder %s26, %s29
      %p35 = scmp.eq.s32.totalorder %s16, 0
      %p36 = por %p34, %p35
      %p37 = scmp.ne.s32.totalorder %s26, %s29
      %p38 = scmp.eq.s32.totalorder %s21, 1
      %p39 = por %p37, %p38
      %p40 = scmp.ne.s32.totalorder %s29, %s30
      %p41 = scmp.eq.s32.totalorder %s21, 0
      %p42 = por %p40, %p41
      %p43 = scmp.ne.s32.totalorder %s29, %s30
      %p44 = scmp.eq.s32.totalorder %s22, 1
      %p45 = por %p43, %p44
      %p47 = scmp.ne.s32.totalorder %s30, %s46
      %p48 = scmp.eq.s32.totalorder %s22, 0
      %p49 = por %p47, %p48
      %s51 = sadd.s32 %s50, 1
      %p54 = scmp.eq.s32.totalorder %s16, 1
      %p55 = scmp.ne.s32.totalorder %s50, %s52
      %p56 = scmp.eq.s32.totalorder %s16, 0
      %p57 = por %p55, %p56
      %p58 = scmp.ne.s32.totalorder %s50, %s52
      %p59 = scmp.eq.s32.totalorder %s21, 1
      %p60 = por %p58, %p59
      %p61 = scmp.ne.s32.totalorder %s52, %s53
      %p62 = scmp.eq.s32.totalorder %s21, 0
      %p63 = por %p61, %p62
      %p64 = scmp.ne.s32.totalorder %s52, %s53
      %p65 = scmp.eq.s32.totalorder %s22, 1
      %p66 = por %p64, %p65
      %p68 = scmp.ne.s32.totalorder %s53, %s67
      %p69 = scmp.eq.s32.totalorder %s22, 0
      %p70 = por %p68, %p69
      %s72 = sadd.s32 %s71, 1
      %p75 = scmp.eq.s32.totalorder %s16, 1
      %p76 = scmp.ne.s32.totalorder %s71, %s73
      %p77 = scmp.eq.s32.totalorder %s16, 0
      %p78 = por %p76, %p77
      %p79 = scmp.ne.s32.totalorder %s71, %s73
      %p80 = scmp.eq.s32.totalorder %s21, 1
      %p81 = por %p79, %p80
      %p82 = scmp.ne.s32.totalorder %s73, %s74
      %p83 = scmp.eq.s32.totalorder %s21, 0
      %p84 = por %p82, %p83
      %p85 = scmp.ne.s32.totalorder %s73, %s74
      %p86 = scmp.eq.s32.totalorder %s22, 1
      %p87 = por %p85, %p86
      %p89 = scmp.ne.s32.totalorder %s74, %s88
      %p90 = scmp.eq.s32.totalorder %s22, 0
      %p91 = por %p89, %p90
      %s92 = ssub.s32 %s16, %s23
      %p93 = scmp.eq.s32.totalorder %s92, 0
      %s95 = sadd.s32 %s94, 1
      %s96 = scalar_select %p93, %s94, %s95
      %p99 = pneg %p93
      %p100 = scmp.eq.s32.totalorder %s16, 1
      %p101 = por %p99, %p100
      %p102 = scmp.ne.s32.totalorder %s94, %s97
      %p103 = scmp.eq.s32.totalorder %s16, 0
      %p104 = por %p102, %p103
      %p105 = scmp.ne.s32.totalorder %s94, %s97
      %p106 = scmp.eq.s32.totalorder %s21, 1
      %p107 = por %p105, %p106
      %p108 = scmp.ne.s32.totalorder %s97, %s98
      %p109 = scmp.eq.s32.totalorder %s21, 0
      %p110 = por %p108, %p109
      %p111 = scmp.ne.s32.totalorder %s97, %s98
      %p112 = scmp.eq.s32.totalorder %s22, 1
      %p113 = por %p111, %p112
      %p115 = scmp.ne.s32.totalorder %s98, %s114
      %p116 = scmp.eq.s32.totalorder %s22, 0
      %p117 = por %p115, %p116
      %p118 = scmp.le.s32.totalorder 1, %s16
      %p119 = scmp.lt.s32.totalorder %s16, 3
      %p120 = pnand %p118, %p119
      %p121 = pneg %p120
      // Predicated region
      $region9: #{tpu_custom_call.1} parent=5 // pred_check
        _
      $region10: #{tpu_custom_call.1} parent=5 // pred_check_branch
        %123 = sbr.rel (%p120) target = $region12
      $region11: #{tpu_custom_call.1} parent=5 // pred_region
        %s124 = ssub.s32 %s16, 1
        // Predicated region
        $region13: #{tpu_custom_call.1} parent=11 // pred_check
          %p125 = pneg %p63
        $region14: #{tpu_custom_call.1} parent=11 // pred_check_branch
          %127 = sbr.rel (%p125) target = $region16
        $region15: #{tpu_custom_call.1} parent=11 // pred_region
          %129 = vsyncadd [#allocation6], 0
          %s131 = sshll.u32 %s1, 4
          %s132 = int_to_ptr.hbm [resolvable:$true] %s131
          %s133 = sshll.u32 [#allocation5], 4
          %s134 = int_to_ptr.vmem [resolvable:$true] %s133
          %136 = dma.hbm_to_vmem [thread:$0]  %s132, 16, %s134, [#allocation6]
        $region16: #{tpu_custom_call.1} parent=11 // pred_fallthru
          _
        // Predicated region
        $region17: #{tpu_custom_call.1} parent=11 // pred_check
          %p137 = pneg %p84
        $region18: #{tpu_custom_call.1} parent=11 // pred_check_branch
          %139 = sbr.rel (%p137) target = $region20
        $region19: #{tpu_custom_call.1} parent=11 // pred_region
          _
        $region20: #{tpu_custom_call.1} parent=11 // pred_fallthru
          _
      $region12: #{tpu_custom_call.1} parent=5 // pred_fallthru
        _
      %p140 = scmp.lt.s32.totalorder %s16, 2
      // Predicated region
      $region21: #{tpu_custom_call.1} parent=5 // pred_check
        %p141 = pneg %p140
      $region22: #{tpu_custom_call.1} parent=5 // pred_check_branch
        %143 = sbr.rel (%p141) target = $region24
      $region23: #{tpu_custom_call.1} parent=5 // pred_region
        // Predicated region
        $region25: #{tpu_custom_call.1} parent=23 // pred_check
          %p144 = pneg %p36
        $region26: #{tpu_custom_call.1} parent=23 // pred_check_branch
          %146 = sbr.rel (%p144) target = $region28
        $region27: #{tpu_custom_call.1} parent=23 // pred_region
          %s147 = sand.u32 %s26, 1
          %s148 = scalar_lea.sflag [#allocation3], %s147
          %s149 = sand.u32 %s26, 1
          %s150 = smul.addr %s149, 8
          %s151 = scalar_lea.vmem [#allocation2], %s150
          %153 = vsyncadd %s148, 0
          %s154 = smul.addr %s16, 8
          %s155 = scalar_lea.hbm %s0, %s154
          %s157 = sshll.u32 %s155, 4
          %s158 = int_to_ptr.hbm [resolvable:$true] %s157
          %s159 = sshll.u32 %s151, 4
          %s160 = int_to_ptr.vmem [resolvable:$true] %s159
          %162 = dma.hbm_to_vmem [thread:$0]  %s158, 128, %s160, %s148
        $region28: #{tpu_custom_call.1} parent=23 // pred_fallthru
          _
      $region24: #{tpu_custom_call.1} parent=5 // pred_fallthru
        _
      %p163 = scmp.le.s32.totalorder 1, %s16
      %p164 = scmp.lt.s32.totalorder %s16, 3
      %p165 = pnand %p163, %p164
      %p166 = pneg %p165
      // Predicated region
      $region29: #{tpu_custom_call.1} parent=5 // pred_check
        _
      $region30: #{tpu_custom_call.1} parent=5 // pred_check_branch
        %168 = sbr.rel (%p165) target = $region32
      $region31: #{tpu_custom_call.1} parent=5 // pred_region
        %s169 = ssub.s32 %s16, 1
        %s170 = sand.u32 %s29, 1
        %s171 = scalar_lea.sflag [#allocation3], %s170
        %s172 = sand.u32 %s29, 1
        %s173 = smul.addr %s172, 8
        %s174 = scalar_lea.vmem [#allocation2], %s173
        // Predicated region
        $region33: #{tpu_custom_call.1} parent=31 // pred_check
          %p175 = pneg %p42
        $region34: #{tpu_custom_call.1} parent=31 // pred_check_branch
          %177 = sbr.rel (%p175) target = $region36
        $region35: #{tpu_custom_call.1} parent=31 // pred_region
          %179 = dma.done %s171, 128
        $region36: #{tpu_custom_call.1} parent=31 // pred_fallthru
          _
        // Predicated region
        $region37: #{tpu_custom_call.1} parent=31 // pred_check
          %p180 = pneg %p63
        $region38: #{tpu_custom_call.1} parent=31 // pred_check_branch
          %182 = sbr.rel (%p180) target = $region40
        $region39: #{tpu_custom_call.1} parent=31 // pred_region
          %184 = dma.done [#allocation6], 16
        $region40: #{tpu_custom_call.1} parent=31 // pred_fallthru
          _
        %s185 = sand.u32 %s29, 1
        %s186 = scalar_lea.sflag [#allocation3], %s185
        %s187 = sand.u32 %s29, 1
        %s188 = smul.addr %s187, 8
        %s189 = scalar_lea.vmem [#allocation2], %s188
        %p190 = pneg %p42
        %p191 = pneg %p39
        %p192 = pneg %p63
        %p193 = pneg %p60
        %p194 = pneg %p84
        %p195 = pneg %p81
        %p196 = pneg %p110
        %p197 = pneg %p107
        %s198 = sand.u32 %s97, 1
        %s199 = scalar_lea.sflag [#allocation4], %s198
        %s200 = sand.u32 %s97, 1
        %s201 = smul.addr %s200, 8
        %s202 = scalar_lea.vmem [#allocation7], %s201
        %v203 = vld [vmem:[%s174] sm:$0xff]
        %vm204 = vcmask 261120
        %v205 = vsel %vm204, %v203, 0.0
        %206 = vadd.xlane.f32.xlu0 %v205
        %v207 = vpop.xlane.xlu0 %206
        %v208 = vmul.f32 %v207, 0.03125
        %v209 = vsub.f32 %v203, %v208
        %v210 = vmul.f32 %v209, %v209
        %v211 = vsel %vm204, %v210, 0.0
        %212 = vadd.xlane.f32.xlu0 %v211
        %v213 = vpop.xlane.xlu0 %212
        %v214 = vmul.f32 %v213, 0.032258064
        %v215 = vrsqrt.pop %v214
        %v216 = vmul.f32 %v215, %v214
        %v217 = vmul.f32 %v216, %v215
        %v218 = vmul.f32 0.5, %v217
        %v219 = vsub.f32 1.5, %v218
        %v220 = vmul.f32 %v215, %v219
        %v221 = vmul.f32 %v214, %v220
        %vm222 = vcmp.eq.f32.partialorder %v214, inf
        %v223 = vsel %vm222, %v214, %v221
        %vm224 = vcmp.eq.f32.partialorder %v214, 0.0
        %v225 = vand.u32 %v214, 2147483648
        %v226 = vsel %vm224, %v225, %v223
        %v227 = vadd.f32 %v226, 1e-06
        %v228 = vrcp.pop %v227
        %v229 = vmul.f32 %v227, %v228
        %v230 = vsub.f32 1.0, %v229
        %v231 = vmul.f32 %v228, %v230
        %v232 = vadd.f32 %v228, %v231
        %vm233 = vweird.f32 %v227
        %vm234 = vweird.f32 %v228
        %vm235 = vmor %vm233, %vm234
        %v236 = vsel %vm235, %v228, %v232
        %v237 = vand.u32 2147483647, %v227
        %vm238 = vcmp.eq.f32.partialorder %v237, 8.507059e+37
        %v239 = vand.u32 %v227, 2147483648
        %v240 = vor.u32 1.1754944e-38, %v239
        %v241 = vsel %vm238, %v240, %v236
        %v242 = vld [vmem:[#allocation5] sm:$0x1]
        %v243 = vmul.f32 %v209, %v241
        %v245 = vperm.slane %v242, 0
        %v247 = vmul.f32 %v245, %v243
        %v248 = vld [vmem:[%s2] sm:$0x1]
        %v250 = vperm.slane %v248, 0
        %v252 = vadd.f32 %v247, %v250
        %253 = vst.msk [vmem:[%s202] sm:$0xff] %vm204, %v252
        %s254 = sand.u32 %s97, 1
        %s255 = scalar_lea.sflag [#allocation4], %s254
        %s256 = sand.u32 %s97, 1
        %s257 = smul.addr %s256, 8
        %s258 = scalar_lea.vmem [#allocation7], %s257
        // Predicated region
        $region41: #{tpu_custom_call.1} parent=31 // pred_check
          %p259 = pneg %p107
        $region42: #{tpu_custom_call.1} parent=31 // pred_check_branch
          %261 = sbr.rel (%p259) target = $region44
        $region43: #{tpu_custom_call.1} parent=31 // pred_region
          %263 = vsyncadd %s255, 0
          %s264 = smul.addr %s21, 8
          %s265 = scalar_lea.hbm %s3, %s264
          %s267 = sshll.u32 %s258, 4
          %s268 = int_to_ptr.vmem [resolvable:$true] %s267
          %s269 = sshll.u32 %s265, 4
          %s270 = int_to_ptr.hbm [resolvable:$true] %s269
          %272 = dma.vmem_to_hbm [thread:$0]  %s268, 128, %s270, %s255
        $region44: #{tpu_custom_call.1} parent=31 // pred_fallthru
          _
      $region32: #{tpu_custom_call.1} parent=5 // pred_fallthru
        _
      %p273 = scmp.le.s32.totalorder 2, %s16
      // Predicated region
      $region45: #{tpu_custom_call.1} parent=5 // pred_check
        %p274 = pneg %p273
      $region46: #{tpu_custom_call.1} parent=5 // pred_check_branch
        %276 = sbr.rel (%p274) target = $region48
      $region47: #{tpu_custom_call.1} parent=5 // pred_region
        %s277 = ssub.s32 %s16, 2
        // Predicated region
        $region49: #{tpu_custom_call.1} parent=47 // pred_check
          %p278 = pneg %p113
        $region50: #{tpu_custom_call.1} parent=47 // pred_check_branch
          %280 = sbr.rel (%p278) target = $region52
        $region51: #{tpu_custom_call.1} parent=47 // pred_region
          %s281 = sand.u32 %s98, 1
          %s282 = scalar_lea.sflag [#allocation4], %s281
          %s283 = sand.u32 %s98, 1
          %s284 = smul.addr %s283, 8
          %s285 = scalar_lea.vmem [#allocation7], %s284
          %287 = dma.done %s282, 128
        $region52: #{tpu_custom_call.1} parent=47 // pred_fallthru
          _
      $region48: #{tpu_custom_call.1} parent=5 // pred_fallthru
        _
    $region6: #{tpu_custom_call.1} parent=1 // loop_footer
      %s20 = sadd.s32 1, %s16
    $region7: #{tpu_custom_call.1} parent=1 // loop_footer_branch
      %15 = sbr.rel target = $region3
    $region8: #{tpu_custom_call.1} parent=1 // loop_exit
      _
    %288 = vsyncpa [#allocation3], 1
    %s289 = scalar_lea.sflag [#allocation3], 1
    %290 = vsyncpa %s289, 1
    %291 = vsyncpa [#allocation6], 1
    %292 = vsyncpa [#allocation4], 1
    %s293 = scalar_lea.sflag [#allocation4], 1
    %294 = vsyncpa %s293, 1

</llo_original>
